<compile_context>
chip_gen: v6e
topology: v6e:2x2x1
jax: 0.10.0
libtpu: 0.0.40
codegen_flags: <defaults>
</compile_context>

<pallas_src>
import functools

import jax
import jax.numpy as jnp
from jax import lax
from jax.experimental import pallas as pl
from jax.experimental.pallas import tpu as pltpu


# ---------------------------------------------------------------------------
# Tiling helpers
# ---------------------------------------------------------------------------
def _round_up(x, m):
    return ((x + m - 1) // m) * m


def _pick_tile(dim, candidates):
    """Largest candidate tile dividing `dim`; else a single full block for small
    dims (always legal), else 256-tiles over a zero-padded dimension."""
    for t in candidates:
        if dim % t == 0:
            return t, dim
    if dim <= candidates[0]:
        return dim, dim                      # one full-extent block
    return 256, _round_up(dim, 256)          # pad, keep MXU-friendly 256 tiles


# ---------------------------------------------------------------------------
# Kernel 1: tiled linear  y = x @ w + b   (f32 accumulation, cast on store)
# ---------------------------------------------------------------------------
def _linear_kernel(x_ref, w_ref, b_ref, o_ref, acc_ref):
    kk = pl.program_id(2)

    @pl.when(kk == 0)
    def _():
        acc_ref[...] = jnp.zeros_like(acc_ref)

    # Native-dtype operands into the MXU, f32 accumulation.
    acc_ref[...] += jnp.dot(x_ref[...], w_ref[...],
                            preferred_element_type=jnp.float32)

    @pl.when(kk == pl.num_programs(2) - 1)
    def _():
        o_ref[...] = (acc_ref[...] + b_ref[...].astype(jnp.float32)).astype(o_ref.dtype)


def linear(x2d, w, b=None):
    """x2d: (M, K), w: (K, Nout), b: (Nout,) or None -> (M, Nout)."""
    M, K = x2d.shape
    Kw, Nout = w.shape
    assert K == Kw
    if b is None:
        b = jnp.zeros((Nout,), dtype=x2d.dtype)

    tm, Mp = _pick_tile(M, (512, 256, 128))
    tn, Np = _pick_tile(Nout, (512, 384, 256, 128))
    tk, Kp = _pick_tile(K, (512, 384, 256, 128))

    # Zero padding is exact for a GEMM (+bias); padded rows/cols are sliced off.
    xp = x2d if (Mp == M and Kp == K) else jnp.pad(x2d, ((0, Mp - M), (0, Kp - K)))
    wp = w if (Kp == K and Np == Nout) else jnp.pad(w, ((0, Kp - K), (0, Np - Nout)))
    bp = b if Np == Nout else jnp.pad(b, (0, Np - Nout))
    b2d = bp.reshape(1, Np)

    grid = (Mp // tm, Np // tn, Kp // tk)
    out = pl.pallas_call(
        _linear_kernel,
        out_shape=jax.ShapeDtypeStruct((Mp, Np), x2d.dtype),
        grid_spec=pltpu.PrefetchScalarGridSpec(
            num_scalar_prefetch=0,
            grid=grid,
            in_specs=[
                pl.BlockSpec((tm, tk), lambda i, j, kk: (i, kk)),
                pl.BlockSpec((tk, tn), lambda i, j, kk: (kk, j)),
                pl.BlockSpec((1, tn), lambda i, j, kk: (0, j)),
            ],
            out_specs=pl.BlockSpec((tm, tn), lambda i, j, kk: (i, j)),
            scratch_shapes=[pltpu.VMEM((tm, tn), jnp.float32)],
        ),
        compiler_params=pltpu.CompilerParams(
            dimension_semantics=("parallel", "parallel", "arbitrary")
        ),
    )(xp, wp, b2d)

    if Mp != M or Np != Nout:
        out = out[:M, :Nout]
    return out


# ---------------------------------------------------------------------------
# Kernel 2: multi-head attention (online softmax, f32 state, native-dtype MXU)
# q, k, v: (B*H, N, Dh); grid = (B*H, q-tiles, kv-tiles)
# ---------------------------------------------------------------------------
def _attn_kernel(q_ref, k_ref, v_ref, o_ref, qs_sc, m_sc, l_sc, acc_sc, *,
                 scale, tkv, kv_valid):
    kv = pl.program_id(2)

    @pl.when(kv == 0)
    def _():
        # q block is resident across the kv loop: scale it once, keep in VMEM.
        qs_sc[...] = q_ref[0] * scale
        m_sc[...] = jnp.full_like(m_sc, -jnp.inf)
        l_sc[...] = jnp.zeros_like(l_sc)
        acc_sc[...] = jnp.zeros_like(acc_sc)

    q = qs_sc[...]            # native dtype straight into the MXU
    k = k_ref[0]
    v = v_ref[0]

    # s = q @ k^T (contract Dh with Dh), f32 accumulation on the MXU.
    s = lax.dot_general(q, k, (((1,), (1,)), ((), ())),
                        preferred_element_type=jnp.float32)

    if kv_valid is not None:  # compile-time flag: sequence was zero-padded
        col = kv * tkv + lax.broadcasted_iota(jnp.int32, s.shape, 1)
        s = jnp.where(col < kv_valid, s, -jnp.inf)

    m_prev = m_sc[...]
    m_new = jnp.maximum(m_prev, jnp.max(s, axis=-1, keepdims=True))
    alpha = jnp.exp(m_prev - m_new)
    p = jnp.exp(s - m_new)
    l_sc[...] = alpha * l_sc[...] + jnp.sum(p, axis=-1, keepdims=True)
    acc_sc[...] = alpha * acc_sc[...] + jnp.dot(
        p.astype(v.dtype), v, preferred_element_type=jnp.float32)
    m_sc[...] = m_new

    @pl.when(kv == pl.num_programs(2) - 1)
    def _():
        inv_l = pl.reciprocal(l_sc[...], approx=True)
        o_ref[0] = (acc_sc[...] * inv_l).astype(o_ref.dtype)


def attention(q, k, v, scale):
    BH, N, Dh = q.shape

    # Tile selection: big tiles for MXU occupancy, padding (not a giant full-N
    # block) for non-128-divisible sequence lengths; padding < tkv always, so
    # no kv tile is ever fully masked.
    if N % 128 == 0:
        tq = 256 if N % 256 == 0 else 128
        tkv = 512 if N % 512 == 0 else (256 if N % 256 == 0 else 128)
        Np = N
    elif N <= 512:
        Np = _round_up(N, 8)
        tq = tkv = Np
    else:
        tq, tkv = 256, 512
        Np = _round_up(N, 512)

    kv_valid = None if Np == N else N
    if Np != N:
        pad = ((0, 0), (0, Np - N), (0, 0))
        q = jnp.pad(q, pad)
        k = jnp.pad(k, pad)
        v = jnp.pad(v, pad)

    grid = (BH, Np // tq, Np // tkv)
    kernel = functools.partial(_attn_kernel, scale=float(scale), tkv=tkv,
                               kv_valid=kv_valid)
    out = pl.pallas_call(
        kernel,
        out_shape=jax.ShapeDtypeStruct((BH, Np, Dh), q.dtype),
        grid_spec=pltpu.PrefetchScalarGridSpec(
            num_scalar_prefetch=0,
            grid=grid,
            in_specs=[
                pl.BlockSpec((1, tq, Dh), lambda b, i, j: (b, i, 0)),
                pl.BlockSpec((1, tkv, Dh), lambda b, i, j: (b, j, 0)),
                pl.BlockSpec((1, tkv, Dh), lambda b, i, j: (b, j, 0)),
            ],
            out_specs=pl.BlockSpec((1, tq, Dh), lambda b, i, j: (b, i, 0)),
            scratch_shapes=[
                pltpu.VMEM((tq, Dh), q.dtype),      # scaled q (hoisted out of kv loop)
                pltpu.VMEM((tq, 1), jnp.float32),   # running max m
                pltpu.VMEM((tq, 1), jnp.float32),   # running denom l
                pltpu.VMEM((tq, Dh), jnp.float32),  # f32 output accumulator
            ],
        ),
        compiler_params=pltpu.CompilerParams(
            dimension_semantics=("parallel", "parallel", "arbitrary")
        ),
    )(q, k, v)

    if Np != N:
        out = out[:, :N, :]
    return out


# ---------------------------------------------------------------------------
# Full forward pass of SeqParallelAttention (single device, sp_size = 1).
# ---------------------------------------------------------------------------
def seq_parallel_attention(x, w_qkv, b_qkv, w_proj, b_proj, num_heads):
    B, N, C = x.shape
    assert C % num_heads == 0
    Dh = C // num_heads
    scale = Dh ** -0.5

    # TODO(synk): sequence-parallel all_to_all (scatter heads / gather seq) is a
    # multi-device collective; with sp_size=1 it is the identity and is omitted.
    x2d = x.reshape(B * N, C)
    qkv = linear(x2d, w_qkv, b_qkv)                      # (B*N, 3C)

    # TODO(synk): this head split/merge transpose pair could be folded into the
    # attention BlockSpecs (reading (B*N, 3C) directly) when head_dim % 128 == 0;
    # for general head_dim it would violate the (8,128) block-layout rule.
    qkv = qkv.reshape(B, N, 3, num_heads, Dh).transpose(2, 0, 3, 1, 4)
    q = qkv[0].reshape(B * num_heads, N, Dh)
    k = qkv[1].reshape(B * num_heads, N, Dh)
    v = qkv[2].reshape(B * num_heads, N, Dh)

    o = attention(q, k, v, scale)                        # (B*H, N, Dh)
    o = o.reshape(B, num_heads, N, Dh).transpose(0, 2, 1, 3).reshape(B * N, C)

    out = linear(o, w_proj, b_proj)                      # (B*N, C)
    return out.reshape(B, N, C)


# ---------------------------------------------------------------------------
# Pure-JAX reference (mirrors the PyTorch vanilla attention path).
# ---------------------------------------------------------------------------
def _reference(x, w_qkv, b_qkv, w_proj, b_proj, num_heads):
    B, N, C = x.shape
    Dh = C // num_heads
    scale = Dh ** -0.5
    qkv = x @ w_qkv
    if b_qkv is not None:
        qkv = qkv + b_qkv
    qkv = qkv.reshape(B, N, 3, num_heads, Dh).transpose(2, 0, 3, 1, 4)
    q, k, v = qkv[0], qkv[1], qkv[2]
    q = q * scale
    attn = jnp.einsum("bhqd,bhkd->bhqk", q, k).astype(jnp.float32)
    attn = jax.nn.softmax(attn, axis=-1).astype(x.dtype)
    o = jnp.einsum("bhqk,bhkd->bhqd", attn, v)
    o = o.transpose(0, 2, 1, 3).reshape(B, N, C)
    return o @ w_proj + b_proj


if __name__ == "__main__":
    key = jax.random.PRNGKey(0)
    B, N, C = 2, 16, 32
    num_heads = 4  # head_dim = 8

    k0, k1, k2, k3 = jax.random.split(key, 4)
    x = jax.random.normal(k0, (B, N, C), dtype=jnp.float32)
    # Weights stored as (in_features, out_features), i.e. already transposed
    # relative to torch.nn.Linear's (out, in) layout.
    w_qkv = jax.random.normal(k1, (C, 3 * C), dtype=jnp.float32) / jnp.sqrt(C)
    b_qkv = None                                         # qkv_bias=False (default)
    w_proj = jax.random.normal(k2, (C, C), dtype=jnp.float32) / jnp.sqrt(C)
    b_proj = 0.02 * jax.random.normal(k3, (C,), dtype=jnp.float32)

    out = seq_parallel_attention(x, w_qkv, b_qkv, w_proj, b_proj, num_heads)
    out = jax.block_until_ready(out)

    ref = _reference(x, w_qkv, b_qkv, w_proj, b_proj, num_heads)
    assert out.shape == (B, N, C), out.shape
    # Tolerance loosened slightly for the approximate (EUP) reciprocal epilogue.
    assert jnp.allclose(out, ref, atol=1e-2, rtol=1e-2), float(
        jnp.max(jnp.abs(out - ref)))

    print("KERNEL_OK")
</pallas_src>

<mosaic_0001>
module attributes {stable_mosaic.version = 11 : i64} {
  func.func @_linear_kernel(%arg0: i32, %arg1: i32, %arg2: i32, %arg3: memref<32x32xf32, #tpu.memory_space<vmem>>, %arg4: memref<32x96xf32, #tpu.memory_space<vmem>>, %arg5: memref<1x96xf32, #tpu.memory_space<vmem>>, %arg6: memref<32x96xf32, #tpu.memory_space<vmem>>, %arg7: memref<32x96xf32, #tpu.memory_space<vmem>>) attributes {dimension_semantics = [#tpu.dimension_semantics<parallel>, #tpu.dimension_semantics<parallel>, #tpu.dimension_semantics<arbitrary>], iteration_bounds = array<i64: 1, 1, 1>, scalar_prefetch = 0 : i64, scratch_operands = 1 : i64, tpu.core_type = #tpu.core_type<tc>, window_params = [{transform_indices = @transform_0, window_bounds = array<i64: 32, 32>}, {transform_indices = @transform_1, window_bounds = array<i64: 32, 96>}, {transform_indices = @transform_2, window_bounds = array<i64: 1, 96>}, {transform_indices = @transform_3, window_bounds = array<i64: 32, 96>}]} {
    %c0_i32 = arith.constant 0 : i32
    %0 = arith.cmpi eq, %arg2, %c0_i32 : i32
    %1 = arith.extui %0 : i1 to i32
    %c0_i32_0 = arith.constant 0 : i32
    %2 = arith.cmpi ne, %1, %c0_i32_0 : i32
    scf.if %2 {
      %cst_10 = arith.constant 0.000000e+00 : f32
      %12 = vector.broadcast %cst_10 : f32 to vector<32x96xf32>
      %c0_11 = arith.constant 0 : index
      %c0_12 = arith.constant 0 : index
      %13 = vector.load %arg7[%c0_11, %c0_12] : memref<32x96xf32, #tpu.memory_space<vmem>>, vector<32x96xf32>
      tpu.vector_store %arg7[%c0_11, %c0_12], %12 {strides = array<i32>} : memref<32x96xf32, #tpu.memory_space<vmem>>, vector<32x96xf32>,
    } else {
    }
    %c0 = arith.constant 0 : index
    %c0_1 = arith.constant 0 : index
    %3 = vector.load %arg7[%c0, %c0_1] : memref<32x96xf32, #tpu.memory_space<vmem>>, vector<32x96xf32>
    %c0_2 = arith.constant 0 : index
    %c0_3 = arith.constant 0 : index
    %4 = vector.load %arg3[%c0_2, %c0_3] : memref<32x32xf32, #tpu.memory_space<vmem>>, vector<32x32xf32>
    %c0_4 = arith.constant 0 : index
    %c0_5 = arith.constant 0 : index
    %5 = vector.load %arg4[%c0_4, %c0_5] : memref<32x96xf32, #tpu.memory_space<vmem>>, vector<32x96xf32>
    %cst = arith.constant dense<0.000000e+00> : vector<32x96xf32>
    %6 = tpu.matmul %4, %5, %cst {dimension_numbers = #tpu.dot_dimension_numbers<[1], [0], [0], [1], [0, 0, 1, 1], [], []>} : vector<32x32xf32>, vector<32x96xf32>, vector<32x96xf32> -> vector<32x96xf32>
    %7 = arith.addf %3, %6 : vector<32x96xf32>
    %c0_6 = arith.constant 0 : index
    %c0_7 = arith.constant 0 : index
    %8 = vector.load %arg7[%c0_6, %c0_7] : memref<32x96xf32, #tpu.memory_space<vmem>>, vector<32x96xf32>
    tpu.vector_store %arg7[%c0_6, %c0_7], %7 {strides = array<i32>} : memref<32x96xf32, #tpu.memory_space<vmem>>, vector<32x96xf32>,
    %c0_i32_8 = arith.constant 0 : i32
    %9 = arith.cmpi eq, %arg2, %c0_i32_8 : i32
    %10 = arith.extui %9 : i1 to i32
    %c0_i32_9 = arith.constant 0 : i32
    %11 = arith.cmpi ne, %10, %c0_i32_9 : i32
    scf.if %11 {
      %c0_10 = arith.constant 0 : index
      %c0_11 = arith.constant 0 : index
      %12 = vector.load %arg7[%c0_10, %c0_11] : memref<32x96xf32, #tpu.memory_space<vmem>>, vector<32x96xf32>
      %c0_12 = arith.constant 0 : index
      %c0_13 = arith.constant 0 : index
      %13 = vector.load %arg5[%c0_12, %c0_13] : memref<1x96xf32, #tpu.memory_space<vmem>>, vector<1x96xf32>
      %14 = vector.broadcast %13 : vector<1x96xf32> to vector<32x96xf32>
      %15 = arith.addf %12, %14 : vector<32x96xf32>
      %c0_14 = arith.constant 0 : index
      %c0_15 = arith.constant 0 : index
      %16 = vector.load %arg6[%c0_14, %c0_15] : memref<32x96xf32, #tpu.memory_space<vmem>>, vector<32x96xf32>
      tpu.vector_store %arg6[%c0_14, %c0_15], %15 {strides = array<i32>} : memref<32x96xf32, #tpu.memory_space<vmem>>, vector<32x96xf32>,
    } else {
    }
    return
  }
  func.func @transform_0(%arg0: i32, %arg1: i32, %arg2: i32) -> (i32, i32) {
    %c0_i32 = arith.constant 0 : i32
    return %arg0, %arg2 : i32, i32
  }
  func.func @transform_1(%arg0: i32, %arg1: i32, %arg2: i32) -> (i32, i32) {
    %c0_i32 = arith.constant 0 : i32
    return %arg2, %arg1 : i32, i32
  }
  func.func @transform_2(%arg0: i32, %arg1: i32, %arg2: i32) -> (i32, i32) {
    %c0_i32 = arith.constant 0 : i32
    %c0_i32_0 = arith.constant 0 : i32
    return %c0_i32, %arg1 : i32, i32
  }
  func.func @transform_3(%arg0: i32, %arg1: i32, %arg2: i32) -> (i32, i32) {
    %c0_i32 = arith.constant 0 : i32
    return %arg0, %arg1 : i32, i32
  }
}

</mosaic_0001>

<llo_original>
// kernel: tpu_custom_call.1
$region0: #{tpu_custom_call.1}
  #allocation0 [shape = 'u32[]', space=smem, size = 0x4, offset = 0x4, fixed_abs, tag = 'smem constant byte address 0x4 - core index']
  #allocation1 [shape = 'u32[144,128]{1,0:T(1,128)}', space=vmem, size = 0x12000, scoped, tag = 'internal scratch']
  #allocation2 [shape = 'f32[32,96]{1,0:T(8,128)}', space=vmem, size = 0x4000, scoped, tag = 'scratch operand']
  %s0 = inlined_call_operand.hbm [shape: f32[32,32], index: 0, kind: input, shape index: {}]
  %s1 = inlined_call_operand.hbm [shape: f32[32,96], index: 1, kind: input, shape index: {}]
  %s2 = inlined_call_operand.vmem [shape: f32[1,96], index: 2, kind: input, shape index: {}]
  %s3 = inlined_call_operand.hbm [shape: f32[32,96], index: 3, kind: output, shape index: {}]
  %s4 = sld [smem:[#allocation0]]
  $region38: #{tpu_custom_call.1} parent=0
    _
  %s6 = ssub.s32 1, %s4
  %s7 = scalar_select 0, %s6, %s4
  $region1: #{tpu_custom_call.1} parent=0
    #allocation3 [shape = 'u8[16384]{0}', space=vmem, size = 0x4000, scoped, tag = 'input window, operand 0, single buffered']
    #allocation4 [shape = 's32[1]{0}', space=sflag, size = 0x4, scoped, tag = 'scoped memory for tpu_custom_call.1']
    #allocation5 [shape = 's32[1]{0}', space=sflag, size = 0x4, scoped, tag = 'scoped memory for tpu_custom_call.1']
    #allocation6 [shape = 'u8[16384]{0}', space=vmem, size = 0x4000, scoped, tag = 'input window, operand 1, single buffered']
    #allocation7 [shape = 's32[1]{0}', space=sflag, size = 0x4, scoped, tag = 'scoped memory for tpu_custom_call.1']
    #allocation8 [shape = 'u8[16384]{0}', space=vmem, size = 0x4000, scoped, tag = 'output window, operand 0, single buffered']
    %8 = vsyncpa [#allocation4], 0
    %9 = vsyncpa [#allocation7], 0
    %10 = vsyncpa [#allocation5], 0
    // Predicated region
    $region2: #{tpu_custom_call.1} parent=1 // pred_check
      _
    $region3: #{tpu_custom_call.1} parent=1 // pred_check_branch
      %12 = sbr.rel (0) target = $region5
    $region4: #{tpu_custom_call.1} parent=1 // pred_region
      %s14 = ssub.s32 512, 512
      %15 = vsyncadd [#allocation4], %s14
      %s16 = sshll.u32 [#allocation3], 4
      %s17 = int_to_ptr.vmem [resolvable:$true] %s16
      %22 = dma.hbm_to_vmem [thread:$0]  %s0, 512, %s17, [#allocation4], 128, 128, 8
    $region5: #{tpu_custom_call.1} parent=1 // pred_fallthru
      _
    // Predicated region
    $region6: #{tpu_custom_call.1} parent=1 // pred_check
      _
    $region7: #{tpu_custom_call.1} parent=1 // pred_check_branch
      %24 = sbr.rel (0) target = $region9
    $region8: #{tpu_custom_call.1} parent=1 // pred_region
      %s26 = ssub.s32 512, 512
      %27 = vsyncadd [#allocation7], %s26
      %s28 = sshll.u32 [#allocation6], 4
      %s29 = int_to_ptr.vmem [resolvable:$true] %s28
      %34 = dma.hbm_to_vmem [thread:$0]  %s1, 512, %s29, [#allocation7], 128, 128, 8
    $region9: #{tpu_custom_call.1} parent=1 // pred_fallthru
      _
    // Predicated region
    $region10: #{tpu_custom_call.1} parent=1 // pred_check
      _
    $region11: #{tpu_custom_call.1} parent=1 // pred_check_branch
      %36 = sbr.rel (0) target = $region13
    $region12: #{tpu_custom_call.1} parent=1 // pred_region
      _
    $region13: #{tpu_custom_call.1} parent=1 // pred_fallthru
      _
    // Predicated region
    $region14: #{tpu_custom_call.1} parent=1 // pred_check
      _
    $region15: #{tpu_custom_call.1} parent=1 // pred_check_branch
      %38 = sbr.rel (0) target = $region17
    $region16: #{tpu_custom_call.1} parent=1 // pred_region
      %39 = dma.done [#allocation4], 512
    $region17: #{tpu_custom_call.1} parent=1 // pred_fallthru
      _
    // Predicated region
    $region18: #{tpu_custom_call.1} parent=1 // pred_check
      _
    $region19: #{tpu_custom_call.1} parent=1 // pred_check_branch
      %41 = sbr.rel (0) target = $region21
    $region20: #{tpu_custom_call.1} parent=1 // pred_region
      %42 = dma.done [#allocation7], 512
    $region21: #{tpu_custom_call.1} parent=1 // pred_fallthru
      _
    %p43 = scmp.eq.s32.totalorder 0, 0
    // Predicated region
    $region22: #{tpu_custom_call.1} parent=1 // pred_check
      %p44 = pneg %p43
    $region23: #{tpu_custom_call.1} parent=1 // pred_check_branch
      %46 = sbr.rel (%p44) target = $region25
    $region24: #{tpu_custom_call.1} parent=1 // pred_region
      %vm47 = vcmask 785408
      %48 = vst.msk [vmem:[#allocation2] sm:$0xff] %vm47, 0.0
      %49 = vst.msk [vmem:[#allocation2 + $0x8] sm:$0xff] %vm47, 0.0
      %50 = vst.msk [vmem:[#allocation2 + $0x10] sm:$0xff] %vm47, 0.0
      %51 = vst.msk [vmem:[#allocation2 + $0x18] sm:$0xff] %vm47, 0.0
    $region25: #{tpu_custom_call.1} parent=1 // pred_fallthru
      _
    %v52 = vld [vmem:[#allocation2] sm:$0xff]
    %v53 = vld [vmem:[#allocation2 + $0x8] sm:$0xff]
    %v54 = vld [vmem:[#allocation2 + $0x10] sm:$0xff]
    %v55 = vld [vmem:[#allocation2 + $0x18] sm:$0xff]
    %v56 = vld [vmem:[#allocation3] sm:$0xff]
    %v57 = vld [vmem:[#allocation3 + $0x8] sm:$0xff]
    %v58 = vld [vmem:[#allocation3 + $0x10] sm:$0xff]
    %v59 = vld [vmem:[#allocation3 + $0x18] sm:$0xff]
    %v60 = vld [vmem:[#allocation6] sm:$0xff]
    %v61 = vld [vmem:[#allocation6 + $0x8] sm:$0xff]
    %v62 = vld [vmem:[#allocation6 + $0x10] sm:$0xff]
    %v63 = vld [vmem:[#allocation6 + $0x18] sm:$0xff]
    %vm64 = vcmask 261120
    %v66 = vsel %vm64, %v56, 0
    %v69 = vsel %vm64, %v57, 0
    %v72 = vsel %vm64, %v58, 0
    %v75 = vsel %vm64, %v59, 0
    %77 = vmatprep.subr.mxu0 0.0
    %78 = vmatpush1.msra.mxu0 0.0
    %79 = vmatprep.subr.mxu0 0.0
    %80 = vmatpush1.msra.mxu0 0.0
    %81 = vmatprep.subr.mxu0 0.0
    %82 = vmatpush1.msra.mxu0 0.0
    %83 = vmatprep.subr.mxu0 0.0
    %84 = vmatpush1.msra.mxu0 0.0
    %85 = vmatprep.subr.mxu0 0.0
    %86 = vmatpush1.msra.mxu0 0.0
    %87 = vmatprep.subr.mxu0 0.0
    %88 = vmatpush1.msra.mxu0 0.0
    %89 = vmatprep.subr.mxu0 0.0
    %90 = vmatpush1.msra.mxu0 0.0
    %91 = vmatprep.subr.mxu0 0.0
    %92 = vmatpush1.msra.mxu0 0.0
    %93 = vmatprep.subr.mxu0 0.0
    %94 = vmatpush1.msra.mxu0 0.0
    %95 = vmatprep.subr.mxu0 0.0
    %96 = vmatpush1.msra.mxu0 0.0
    %97 = vmatprep.subr.mxu0 0.0
    %98 = vmatpush1.msra.mxu0 0.0
    %99 = vmatprep.subr.mxu0 0.0
    %100 = vmatpush1.msra.mxu0 0.0
    %101 = vmatprep.subr.mxu0 0.0
    %102 = vmatpush1.msra.mxu0 %v63
    %103 = vmatprep.subr.mxu0 0.0
    %104 = vmatpush1.msra.mxu0 %v62
    %105 = vmatprep.subr.mxu0 0.0
    %106 = vmatpush1.msra.mxu0 %v61
    %107 = vmatprep.subr.mxu0 0.0
    %108 = vmatpush1.msra.mxu0 %v60
    %109 = vmatprep.subr.mxu0 0.0
    %110 = vmatpush2.msra.mxu0 0.0
    %111 = vmatprep.subr.mxu0 0.0
    %112 = vmatpush2.msra.mxu0 0.0
    %113 = vmatprep.subr.mxu0 0.0
    %114 = vmatpush2.msra.mxu0 0.0
    %115 = vmatprep.subr.mxu0 0.0
    %116 = vmatpush2.msra.mxu0 0.0
    %117 = vmatprep.subr.mxu0 0.0
    %118 = vmatpush2.msra.mxu0 0.0
    %119 = vmatprep.subr.mxu0 0.0
    %120 = vmatpush2.msra.mxu0 0.0
    %121 = vmatprep.subr.mxu0 0.0
    %122 = vmatpush2.msra.mxu0 0.0
    %123 = vmatprep.subr.mxu0 0.0
    %124 = vmatpush2.msra.mxu0 0.0
    %125 = vmatprep.subr.mxu0 0.0
    %126 = vmatpush2.msra.mxu0 0.0
    %127 = vmatprep.subr.mxu0 0.0
    %128 = vmatpush2.msra.mxu0 0.0
    %129 = vmatprep.subr.mxu0 0.0
    %130 = vmatpush2.msra.mxu0 0.0
    %131 = vmatprep.subr.mxu0 0.0
    %132 = vmatpush2.msra.mxu0 0.0
    %133 = vmatprep.subr.mxu0 0.0
    %134 = vmatpush2.msra.mxu0 0.0
    %135 = vmatprep.subr.mxu0 0.0
    %136 = vmatpush2.msra.mxu0 0.0
    %137 = vmatprep.subr.mxu0 0.0
    %138 = vmatpush2.msra.mxu0 0.0
    %139 = vmatprep.subr.mxu0 0.0
    %140 = vmatpush2.msra.mxu0 0.0
    %141 = vmatprep.mubr.f32.mxu0 0.0
    %142 = vmatmul.mubr.f32.gmra.mxu0 %v66
    %v143 = vpop.f32.mrf.mxu0
    %v144 = vadd.f32 0.0, %v143
    %v145 = vpop.f32.mrf.mxu0
    %146 = vmatprep.mubr.f32.mxu0 0.0
    %147 = vmatmul.mubr.f32.gmra.mxu0 %v69
    %v148 = vpop.f32.mrf.mxu0
    %v149 = vadd.f32 0.0, %v148
    %v150 = vpop.f32.mrf.mxu0
    %151 = vmatprep.mubr.f32.mxu0 0.0
    %152 = vmatmul.mubr.f32.gmra.mxu0 %v72
    %v153 = vpop.f32.mrf.mxu0
    %v154 = vadd.f32 0.0, %v153
    %v155 = vpop.f32.mrf.mxu0
    %156 = vmatprep.mubr.f32.mxu0 0.0
    %157 = vmatmul.mubr.f32.gmra.mxu0 %v75
    %v158 = vpop.f32.mrf.mxu0
    %v159 = vadd.f32 0.0, %v158
    %v160 = vpop.f32.mrf.mxu0
    %161 = vdwg.mxu0
    %v162 = vadd.f32 %v52, %v144
    %v163 = vadd.f32 %v53, %v149
    %v164 = vadd.f32 %v54, %v154
    %v165 = vadd.f32 %v55, %v159
    %vm166 = vcmask 785408
    %167 = vst.msk [vmem:[#allocation2] sm:$0xff] %vm166, %v162
    %168 = vst.msk [vmem:[#allocation2 + $0x8] sm:$0xff] %vm166, %v163
    %169 = vst.msk [vmem:[#allocation2 + $0x10] sm:$0xff] %vm166, %v164
    %170 = vst.msk [vmem:[#allocation2 + $0x18] sm:$0xff] %vm166, %v165
    // Predicated region
    $region26: #{tpu_custom_call.1} parent=1 // pred_check
      %p171 = pneg %p43
    $region27: #{tpu_custom_call.1} parent=1 // pred_check_branch
      %173 = sbr.rel (%p171) target = $region29
    $region28: #{tpu_custom_call.1} parent=1 // pred_region
      %v174 = vld [vmem:[#allocation2] sm:$0xff]
      %v175 = vld [vmem:[#allocation2 + $0x8] sm:$0xff]
      %v176 = vld [vmem:[#allocation2 + $0x10] sm:$0xff]
      %v177 = vld [vmem:[#allocation2 + $0x18] sm:$0xff]
      %v178 = vld [vmem:[%s2] sm:$0x1]
      %v180 = vlaneseq
      %v181 = vshrl.u32 %v180, 7
      %v182 = vsub.s32 0, %v181
      %v183 = vrot.slane %v178, %v182
      %v185 = vadd.f32 %v174, %v183
      %v186 = vadd.f32 %v175, %v183
      %v187 = vadd.f32 %v176, %v183
      %v188 = vadd.f32 %v177, %v183
      %189 = vst.msk [vmem:[#allocation8] sm:$0xff] %vm166, %v185
      %190 = vst.msk [vmem:[#allocation8 + $0x8] sm:$0xff] %vm166, %v186
      %191 = vst.msk [vmem:[#allocation8 + $0x10] sm:$0xff] %vm166, %v187
      %192 = vst.msk [vmem:[#allocation8 + $0x18] sm:$0xff] %vm166, %v188
    $region29: #{tpu_custom_call.1} parent=1 // pred_fallthru
      _
    // Predicated region
    $region30: #{tpu_custom_call.1} parent=1 // pred_check
      _
    $region31: #{tpu_custom_call.1} parent=1 // pred_check_branch
      %194 = sbr.rel (0) target = $region33
    $region32: #{tpu_custom_call.1} parent=1 // pred_region
      %s196 = ssub.s32 512, 512
      %197 = vsyncadd [#allocation5], %s196
      %s198 = sshll.u32 [#allocation8], 4
      %s199 = int_to_ptr.vmem [resolvable:$true] %s198
      %204 = dma.vmem_to_hbm [thread:$0]  %s199, 512, %s3, [#allocation5], 128, 128, 8
    $region33: #{tpu_custom_call.1} parent=1 // pred_fallthru
      _
    // Predicated region
    $region34: #{tpu_custom_call.1} parent=1 // pred_check
      _
    $region35: #{tpu_custom_call.1} parent=1 // pred_check_branch
      %206 = sbr.rel (0) target = $region37
    $region36: #{tpu_custom_call.1} parent=1 // pred_region
      %207 = dma.done [#allocation5], 512
    $region37: #{tpu_custom_call.1} parent=1 // pred_fallthru
      _
    %208 = vsyncpa [#allocation4], 1
    %209 = vsyncpa [#allocation7], 1
    %210 = vsyncpa [#allocation5], 1

</llo_original>
